<compile_context>
chip_gen: v5e
topology: v5e:2x2
jax: 0.10.0
libtpu: 0.0.40
codegen_flags: <defaults>
</compile_context>

<pallas_src>
import jax
import jax.numpy as jnp
from jax.experimental import pallas as pl
from jax.experimental.pallas import tpu as pltpu

LATENT = 100
HIDDEN = 256
OUT = 784

LATENT_PAD = 128   # 100 -> 128: lane-aligned MXU contraction (zero padded, exact)
OUT_PAD = 896      # 784 -> 7*128: MXU-friendly w2 width (sliced back to 784 in-kernel)


def _round_up(x, m):
    return ((x + m - 1) // m) * m


def _pick_tb(B):
    """Batch tile size.

    Multiple of 16 (bf16 packs 2 rows per sublane), large enough to amortize the
    ~0.35us per-grid-step overhead, and chosen so the grid has >= 2 steps when B
    allows it (v7x shards the 'parallel' batch axis across its 2 TensorCores).
    """
    if B >= 2048:
        return 1024
    if B >= 1024:
        return 512
    if B >= 512:
        return 256
    if B >= 256:
        return 128
    if B > 16:
        return min(128, _round_up((B + 1) // 2, 16))
    return 16


def generator_kernel(z_ref, w1_ref, b1_ref, w2_ref, b2_ref, out_ref):
    # Layer 1: Linear(100->256) + ReLU.  bf16 MXU operands, f32 accumulate,
    # f32 element-wise (v5e VPU has no bf16); the z cast hides under DMA/MXU.
    z = z_ref[...].astype(jnp.bfloat16)
    h = jnp.dot(z, w1_ref[...], preferred_element_type=jnp.float32)
    h = jnp.maximum(h + b1_ref[...], 0.0)

    # Layer 2: Linear(256->784) + Tanh.  w2 is padded to 896 columns for the MXU;
    # drop the padding before the bias/tanh so only 784 columns are stored.
    y = jnp.dot(h.astype(jnp.bfloat16), w2_ref[...],
                preferred_element_type=jnp.float32)
    y = y[:, :OUT] + b2_ref[...]
    out_ref[...] = jnp.tanh(y).astype(out_ref.dtype)   # tanh in f32, store bf16


def prepare_params(w1, b1, w2, b2):
    """One-time layout prep (pad + bf16 cast), hoisted out of the forward call."""
    w1_p = jnp.zeros((LATENT_PAD, HIDDEN), jnp.float32).at[:LATENT, :].set(w1)
    w1_p = w1_p.astype(jnp.bfloat16)
    b1_p = b1.reshape(1, HIDDEN).astype(jnp.float32)
    w2_p = jnp.zeros((HIDDEN, OUT_PAD), jnp.float32).at[:, :OUT].set(w2)
    w2_p = w2_p.astype(jnp.bfloat16)
    b2_p = b2.reshape(1, OUT).astype(jnp.float32)
    return w1_p, b1_p, w2_p, b2_p


def generator_forward(z, w1_p, b1_p, w2_p, b2_p):
    """z: (B, 100) f32; prepared params from prepare_params().
    Returns img: (B, 784) bfloat16 (cast to f32 outside only if needed)."""
    B = z.shape[0]
    TB = _pick_tb(B)
    B_pad = _round_up(B, TB)
    n_tiles = B_pad // TB

    # Zero-pad z: batch -> B_pad, latent 100 -> 128 (exact; padded rows are
    # discarded below).  Kept f32; the bf16 cast happens inside the kernel.
    z_p = jnp.zeros((B_pad, LATENT_PAD), jnp.float32).at[:B, :LATENT].set(z)

    out = pl.pallas_call(
        generator_kernel,
        out_shape=jax.ShapeDtypeStruct((B_pad, OUT), jnp.bfloat16),
        grid=(n_tiles,),
        in_specs=[
            pl.BlockSpec((TB, LATENT_PAD), lambda i: (i, 0)),      # z: streamed per tile
            pl.BlockSpec((LATENT_PAD, HIDDEN), lambda i: (0, 0)),  # w1: VMEM-resident
            pl.BlockSpec((1, HIDDEN), lambda i: (0, 0)),           # b1: VMEM-resident
            pl.BlockSpec((HIDDEN, OUT_PAD), lambda i: (0, 0)),     # w2: VMEM-resident
            pl.BlockSpec((1, OUT), lambda i: (0, 0)),              # b2: VMEM-resident
        ],
        out_specs=pl.BlockSpec((TB, OUT), lambda i: (i, 0)),       # unpadded 784 cols
        compiler_params=pltpu.CompilerParams(
            dimension_semantics=("parallel",),                     # v7x: 2 TCs share batch
        ),
    )(z_p, w1_p, b1_p, w2_p, b2_p)

    # No copy at all when B is already a multiple of the batch tile.
    return out if B_pad == B else out[:B]


def init_params(key):
    """PyTorch nn.Linear default init: U(-1/sqrt(fan_in), 1/sqrt(fan_in)) (f32)."""
    k1, k2, k3, k4 = jax.random.split(key, 4)
    lim1 = 1.0 / jnp.sqrt(100.0)
    lim2 = 1.0 / jnp.sqrt(256.0)
    w1 = jax.random.uniform(k1, (LATENT, HIDDEN), jnp.float32, -lim1, lim1)
    b1 = jax.random.uniform(k2, (1, HIDDEN), jnp.float32, -lim1, lim1)
    w2 = jax.random.uniform(k3, (HIDDEN, OUT), jnp.float32, -lim2, lim2)
    b2 = jax.random.uniform(k4, (1, OUT), jnp.float32, -lim2, lim2)
    return w1, b1, w2, b2


if __name__ == "__main__":
    key = jax.random.PRNGKey(0)
    kz, kp = jax.random.split(key)

    batch = 8
    z = jax.random.normal(kz, (batch, LATENT), dtype=jnp.float32)
    w1, b1, w2, b2 = init_params(kp)
    w1_p, b1_p, w2_p, b2_p = prepare_params(w1, b1, w2, b2)   # one-time prep

    img = generator_forward(z, w1_p, b1_p, w2_p, b2_p)
    img = jax.block_until_ready(img)

    # Reference in plain f32 JAX (same math as the PyTorch module).  The kernel
    # uses bf16 matmul operands and a bf16 output store, so tolerance is relaxed.
    ref = jnp.tanh(jnp.maximum(z @ w1 + b1, 0.0) @ w2 + b2)
    assert img.shape == (batch, OUT)
    err = float(jnp.max(jnp.abs(img.astype(jnp.float32) - ref)))
    assert err < 3e-2, err

    print("KERNEL_OK")
</pallas_src>

<mosaic_0001>
module attributes {stable_mosaic.version = 11 : i64} {
  func.func @generator_kernel(%arg0: i32, %arg1: memref<16x128xf32, #tpu.memory_space<vmem>>, %arg2: memref<128x256xbf16, #tpu.memory_space<vmem>>, %arg3: memref<1x256xf32, #tpu.memory_space<vmem>>, %arg4: memref<256x896xbf16, #tpu.memory_space<vmem>>, %arg5: memref<1x784xf32, #tpu.memory_space<vmem>>, %arg6: memref<16x784xbf16, #tpu.memory_space<vmem>>) attributes {dimension_semantics = [#tpu.dimension_semantics<parallel>], iteration_bounds = array<i64: 1>, scalar_prefetch = 0 : i64, scratch_operands = 0 : i64, tpu.core_type = #tpu.core_type<tc>, window_params = [{transform_indices = @transform_0, window_bounds = array<i64: 16, 128>}, {pipeline_mode = #tpu.pipeline_mode<synchronous>, transform_indices = @transform_1, window_bounds = array<i64: 128, 256>}, {pipeline_mode = #tpu.pipeline_mode<synchronous>, transform_indices = @transform_2, window_bounds = array<i64: 1, 256>}, {pipeline_mode = #tpu.pipeline_mode<synchronous>, transform_indices = @transform_3, window_bounds = array<i64: 256, 896>}, {pipeline_mode = #tpu.pipeline_mode<synchronous>, transform_indices = @transform_4, window_bounds = array<i64: 1, 784>}, {transform_indices = @transform_5, window_bounds = array<i64: 16, 784>}]} {
    %c0 = arith.constant 0 : index
    %c0_0 = arith.constant 0 : index
    %0 = vector.load %arg1[%c0, %c0_0] : memref<16x128xf32, #tpu.memory_space<vmem>>, vector<16x128xf32>
    %1 = arith.truncf %0 : vector<16x128xf32> to vector<16x128xbf16>
    %c0_1 = arith.constant 0 : index
    %c0_2 = arith.constant 0 : index
    %2 = vector.load %arg2[%c0_1, %c0_2] : memref<128x256xbf16, #tpu.memory_space<vmem>>, vector<128x256xbf16>
    %cst = arith.constant dense<0.000000e+00> : vector<16x256xf32>
    %3 = tpu.matmul %1, %2, %cst {dimension_numbers = #tpu.dot_dimension_numbers<[1], [0], [0], [1], [0, 0, 1, 1], [], []>} : vector<16x128xbf16>, vector<128x256xbf16>, vector<16x256xf32> -> vector<16x256xf32>
    %c0_3 = arith.constant 0 : index
    %c0_4 = arith.constant 0 : index
    %4 = vector.load %arg3[%c0_3, %c0_4] : memref<1x256xf32, #tpu.memory_space<vmem>>, vector<1x256xf32>
    %5 = vector.broadcast %4 : vector<1x256xf32> to vector<16x256xf32>
    %6 = arith.addf %3, %5 : vector<16x256xf32>
    %cst_5 = arith.constant 0.000000e+00 : f32
    %7 = vector.broadcast %cst_5 : f32 to vector<16x256xf32>
    %8 = arith.maximumf %6, %7 : vector<16x256xf32>
    %9 = arith.truncf %8 : vector<16x256xf32> to vector<16x256xbf16>
    %c0_6 = arith.constant 0 : index
    %c0_7 = arith.constant 0 : index
    %10 = vector.load %arg4[%c0_6, %c0_7] : memref<256x896xbf16, #tpu.memory_space<vmem>>, vector<256x896xbf16>
    %cst_8 = arith.constant dense<0.000000e+00> : vector<16x896xf32>
    %11 = tpu.matmul %9, %10, %cst_8 {dimension_numbers = #tpu.dot_dimension_numbers<[1], [0], [0], [1], [0, 0, 1, 1], [], []>} : vector<16x256xbf16>, vector<256x896xbf16>, vector<16x896xf32> -> vector<16x896xf32>
    %12 = vector.extract_strided_slice %11 {offsets = [0, 0], sizes = [16, 784], strides = [1, 1]} : vector<16x896xf32> to vector<16x784xf32>
    %c0_9 = arith.constant 0 : index
    %c0_10 = arith.constant 0 : index
    %13 = vector.load %arg5[%c0_9, %c0_10] : memref<1x784xf32, #tpu.memory_space<vmem>>, vector<1x784xf32>
    %14 = vector.broadcast %13 : vector<1x784xf32> to vector<16x784xf32>
    %15 = arith.addf %12, %14 : vector<16x784xf32>
    %16 = math.tanh %15 : vector<16x784xf32>
    %17 = arith.truncf %16 : vector<16x784xf32> to vector<16x784xbf16>
    %c0_11 = arith.constant 0 : index
    %c0_12 = arith.constant 0 : index
    %18 = vector.load %arg6[%c0_11, %c0_12] : memref<16x784xbf16, #tpu.memory_space<vmem>>, vector<16x784xbf16>
    tpu.vector_store %arg6[%c0_11, %c0_12], %17 {strides = array<i32>} : memref<16x784xbf16, #tpu.memory_space<vmem>>, vector<16x784xbf16>,
    return
  }
  func.func @transform_0(%arg0: i32) -> (i32, i32) {
    %c0_i32 = arith.constant 0 : i32
    %c0_i32_0 = arith.constant 0 : i32
    return %arg0, %c0_i32 : i32, i32
  }
  func.func @transform_1(%arg0: i32) -> (i32, i32) {
    %c0_i32 = arith.constant 0 : i32
    %c0_i32_0 = arith.constant 0 : i32
    %c0_i32_1 = arith.constant 0 : i32
    return %c0_i32, %c0_i32_0 : i32, i32
  }
  func.func @transform_2(%arg0: i32) -> (i32, i32) {
    %c0_i32 = arith.constant 0 : i32
    %c0_i32_0 = arith.constant 0 : i32
    %c0_i32_1 = arith.constant 0 : i32
    return %c0_i32, %c0_i32_0 : i32, i32
  }
  func.func @transform_3(%arg0: i32) -> (i32, i32) {
    %c0_i32 = arith.constant 0 : i32
    %c0_i32_0 = arith.constant 0 : i32
    %c0_i32_1 = arith.constant 0 : i32
    return %c0_i32, %c0_i32_0 : i32, i32
  }
  func.func @transform_4(%arg0: i32) -> (i32, i32) {
    %c0_i32 = arith.constant 0 : i32
    %c0_i32_0 = arith.constant 0 : i32
    %c0_i32_1 = arith.constant 0 : i32
    return %c0_i32, %c0_i32_0 : i32, i32
  }
  func.func @transform_5(%arg0: i32) -> (i32, i32) {
    %c0_i32 = arith.constant 0 : i32
    %c0_i32_0 = arith.constant 0 : i32
    return %arg0, %c0_i32 : i32, i32
  }
}

</mosaic_0001>

<llo_original>
// kernel: tpu_custom_call.1
$region0: #{tpu_custom_call.1}
  #allocation0 [shape = 'u32[]', space=smem, size = 0x4, offset = 0x4, fixed_abs, tag = 'smem constant byte address 0x4 - core index']
  #allocation1 [shape = 'u32[72,128]{1,0:T(1,128)}', space=vmem, size = 0x9000, scoped, tag = 'internal scratch']
  %s0 = inlined_call_operand.hbm [shape: f32[16,128], index: 0, kind: input, shape index: {}]
  %s1 = inlined_call_operand.hbm [shape: bf16[128,256], index: 1, kind: input, shape index: {}]
  %s2 = inlined_call_operand.hbm [shape: f32[1,256], index: 2, kind: input, shape index: {}]
  %s3 = inlined_call_operand.hbm [shape: bf16[256,896], index: 3, kind: input, shape index: {}]
  %s4 = inlined_call_operand.hbm [shape: f32[1,784], index: 4, kind: input, shape index: {}]
  %s5 = inlined_call_operand.hbm [shape: bf16[16,784], index: 5, kind: output, shape index: {}]
  %s6 = sld [smem:[#allocation0]]
  $region50: #{tpu_custom_call.1} parent=0
    _
  %s8 = ssub.s32 1, %s6
  %s9 = scalar_select 0, %s8, %s6
  $region1: #{tpu_custom_call.1} parent=0
    #allocation2 [shape = 'u8[8192]{0}', space=vmem, size = 0x2000, scoped, tag = 'input window, operand 0, single buffered']
    #allocation3 [shape = 's32[1]{0}', space=sflag, size = 0x4, scoped, tag = 'scoped memory for tpu_custom_call.1']
    #allocation4 [shape = 's32[1]{0}', space=sflag, size = 0x4, scoped, tag = 'scoped memory for tpu_custom_call.1']
    #allocation5 [shape = 'u8[65536]{0}', space=vmem, size = 0x10000, scoped, tag = 'input window, operand 1, single buffered']
    #allocation6 [shape = 's32[1]{0}', space=sflag, size = 0x4, scoped, tag = 'scoped memory for tpu_custom_call.1']
    #allocation7 [shape = 'u8[1024]{0}', space=vmem, size = 0x400, scoped, tag = 'input window, operand 2, single buffered']
    #allocation8 [shape = 'u8[458752]{0}', space=vmem, size = 0x70000, scoped, tag = 'input window, operand 3, single buffered']
    #allocation9 [shape = 's32[1]{0}', space=sflag, size = 0x4, scoped, tag = 'scoped memory for tpu_custom_call.1']
    #allocation10 [shape = 'u8[3584]{0}', space=vmem, size = 0x1000, scoped, tag = 'input window, operand 4, single buffered']
    #allocation11 [shape = 'u8[28672]{0}', space=vmem, size = 0x7000, scoped, tag = 'output window, operand 0, single buffered']
    %10 = vsyncpa [#allocation3], 0
    %11 = vsyncpa [#allocation6], 0
    %12 = vsyncpa [#allocation9], 0
    %13 = vsyncpa [#allocation4], 0
    // Predicated region
    $region2: #{tpu_custom_call.1} parent=1 // pred_check
      _
    $region3: #{tpu_custom_call.1} parent=1 // pred_check_branch
      %15 = sbr.rel (0) target = $region5
    $region4: #{tpu_custom_call.1} parent=1 // pred_region
      %17 = vsyncadd [#allocation3], 0
      %s18 = sshll.u32 %s0, 4
      %s19 = int_to_ptr.hbm [resolvable:$true] %s18
      %s20 = sshll.u32 [#allocation2], 4
      %s21 = int_to_ptr.vmem [resolvable:$true] %s20
      %26 = dma.hbm_to_vmem [thread:$0]  %s19, 256, %s21, [#allocation3], 128, 128, 8
    $region5: #{tpu_custom_call.1} parent=1 // pred_fallthru
      _
    // Predicated region
    $region6: #{tpu_custom_call.1} parent=1 // pred_check
      _
    $region7: #{tpu_custom_call.1} parent=1 // pred_check_branch
      %28 = sbr.rel (0) target = $region9
    $region8: #{tpu_custom_call.1} parent=1 // pred_region
      %30 = vsyncadd [#allocation6], 0
      %s31 = sshll.u32 %s1, 4
      %s32 = int_to_ptr.hbm [resolvable:$true] %s31
      %s33 = sshll.u32 [#allocation5], 4
      %s34 = int_to_ptr.vmem [resolvable:$true] %s33
      %39 = dma.hbm_to_vmem [thread:$0]  %s32, 2048, %s34, [#allocation6], 128, 128, 8
    $region9: #{tpu_custom_call.1} parent=1 // pred_fallthru
      _
    // Predicated region
    $region10: #{tpu_custom_call.1} parent=1 // pred_check
      _
    $region11: #{tpu_custom_call.1} parent=1 // pred_check_branch
      %41 = sbr.rel (0) target = $region13
    $region12: #{tpu_custom_call.1} parent=1 // pred_region
      %43 = vsyncadd [#allocation6], 0
      %s45 = sshll.u32 %s2, 4
      %s46 = int_to_ptr.hbm [resolvable:$true] %s45
      %s47 = sshll.u32 [#allocation7], 4
      %s48 = int_to_ptr.vmem [resolvable:$true] %s47
      %50 = dma.hbm_to_vmem [thread:$0]  %s46, 32, %s48, [#allocation6]
    $region13: #{tpu_custom_call.1} parent=1 // pred_fallthru
      _
    // Predicated region
    $region14: #{tpu_custom_call.1} parent=1 // pred_check
      _
    $region15: #{tpu_custom_call.1} parent=1 // pred_check_branch
      %52 = sbr.rel (0) target = $region17
    $region16: #{tpu_custom_call.1} parent=1 // pred_region
      %54 = vsyncadd [#allocation9], 0
      %s55 = sshll.u32 %s3, 4
      %s56 = int_to_ptr.hbm [resolvable:$true] %s55
      %s57 = sshll.u32 [#allocation8], 4
      %s58 = int_to_ptr.vmem [resolvable:$true] %s57
      %63 = dma.hbm_to_vmem [thread:$0]  %s56, 14336, %s58, [#allocation9], 448, 448, 28
    $region17: #{tpu_custom_call.1} parent=1 // pred_fallthru
      _
    // Predicated region
    $region18: #{tpu_custom_call.1} parent=1 // pred_check
      _
    $region19: #{tpu_custom_call.1} parent=1 // pred_check_branch
      %65 = sbr.rel (0) target = $region21
    $region20: #{tpu_custom_call.1} parent=1 // pred_region
      %67 = vsyncadd [#allocation9], 0
      %s69 = sshll.u32 %s4, 4
      %s70 = int_to_ptr.hbm [resolvable:$true] %s69
      %s71 = sshll.u32 [#allocation10], 4
      %s72 = int_to_ptr.vmem [resolvable:$true] %s71
      %74 = dma.hbm_to_vmem [thread:$0]  %s70, 112, %s72, [#allocation9]
    $region21: #{tpu_custom_call.1} parent=1 // pred_fallthru
      _
    // Predicated region
    $region22: #{tpu_custom_call.1} parent=1 // pred_check
      _
    $region23: #{tpu_custom_call.1} parent=1 // pred_check_branch
      %76 = sbr.rel (0) target = $region25
    $region24: #{tpu_custom_call.1} parent=1 // pred_region
      %78 = dma.done [#allocation3], 256
    $region25: #{tpu_custom_call.1} parent=1 // pred_fallthru
      _
    // Predicated region
    $region26: #{tpu_custom_call.1} parent=1 // pred_check
      _
    $region27: #{tpu_custom_call.1} parent=1 // pred_check_branch
      %80 = sbr.rel (0) target = $region29
    $region28: #{tpu_custom_call.1} parent=1 // pred_region
      %82 = dma.done [#allocation6], 2048
    $region29: #{tpu_custom_call.1} parent=1 // pred_fallthru
      _
    // Predicated region
    $region30: #{tpu_custom_call.1} parent=1 // pred_check
      _
    $region31: #{tpu_custom_call.1} parent=1 // pred_check_branch
      %84 = sbr.rel (0) target = $region33
    $region32: #{tpu_custom_call.1} parent=1 // pred_region
      %86 = dma.done [#allocation6], 32
    $region33: #{tpu_custom_call.1} parent=1 // pred_fallthru
      _
    // Predicated region
    $region34: #{tpu_custom_call.1} parent=1 // pred_check
      _
    $region35: #{tpu_custom_call.1} parent=1 // pred_check_branch
      %88 = sbr.rel (0) target = $region37
    $region36: #{tpu_custom_call.1} parent=1 // pred_region
      %90 = dma.done [#allocation9], 14336
    $region37: #{tpu_custom_call.1} parent=1 // pred_fallthru
      _
    // Predicated region
    $region38: #{tpu_custom_call.1} parent=1 // pred_check
      _
    $region39: #{tpu_custom_call.1} parent=1 // pred_check_branch
      %92 = sbr.rel (0) target = $region41
    $region40: #{tpu_custom_call.1} parent=1 // pred_region
      %94 = dma.done [#allocation9], 112
    $region41: #{tpu_custom_call.1} parent=1 // pred_fallthru
      _
    %v95 = vld [vmem:[#allocation2] sm:$0xff]
    %v96 = vld [vmem:[#allocation2 + $0x8] sm:$0xff]
    %v97 = vpack.c.bf16 %v96, %v95
    %v98 = vld [vmem:[#allocation5] sm:$0xff]
    %v99 = vld [vmem:[#allocation5 + $0x8] sm:$0xff]
    %v100 = vld [vmem:[#allocation5 + $0x10] sm:$0xff]
    %v101 = vld [vmem:[#allocation5 + $0x18] sm:$0xff]
    %v102 = vld [vmem:[#allocation5 + $0x20] sm:$0xff]
    %v103 = vld [vmem:[#allocation5 + $0x28] sm:$0xff]
    %v104 = vld [vmem:[#allocation5 + $0x30] sm:$0xff]
    %v105 = vld [vmem:[#allocation5 + $0x38] sm:$0xff]
    %v106 = vld [vmem:[#allocation5 + $0x40] sm:$0xff]
    %v107 = vld [vmem:[#allocation5 + $0x48] sm:$0xff]
    %v108 = vld [vmem:[#allocation5 + $0x50] sm:$0xff]
    %v109 = vld [vmem:[#allocation5 + $0x58] sm:$0xff]
    %v110 = vld [vmem:[#allocation5 + $0x60] sm:$0xff]
    %v111 = vld [vmem:[#allocation5 + $0x68] sm:$0xff]
    %v112 = vld [vmem:[#allocation5 + $0x70] sm:$0xff]
    %v113 = vld [vmem:[#allocation5 + $0x78] sm:$0xff]
    %v114 = vld [vmem:[#allocation7] sm:$0x3]
    %v116 = vperm.slane %v114, 0
    %v117 = vperm.slane %v114, 1
    %v136 = vunpack.c.l.b16 %v98
    %v137 = vunpack.c.h.b16 %v98
    %v138 = vunpack.c.l.b16 %v99
    %v139 = vunpack.c.h.b16 %v99
    %v140 = vunpack.c.l.b16 %v100
    %v141 = vunpack.c.h.b16 %v100
    %v142 = vunpack.c.l.b16 %v101
    %v143 = vunpack.c.h.b16 %v101
    %v144 = vunpack.c.l.b16 %v102
    %v145 = vunpack.c.h.b16 %v102
    %v146 = vunpack.c.l.b16 %v103
    %v147 = vunpack.c.h.b16 %v103
    %v148 = vunpack.c.l.b16 %v104
    %v149 = vunpack.c.h.b16 %v104
    %v150 = vunpack.c.l.b16 %v105
    %v151 = vunpack.c.h.b16 %v105
    %v152 = vunpack.c.l.b16 %v106
    %v153 = vunpack.c.h.b16 %v106
    %v154 = vunpack.c.l.b16 %v107
    %v155 = vunpack.c.h.b16 %v107
    %v156 = vunpack.c.l.b16 %v108
    %v157 = vunpack.c.h.b16 %v108
    %v158 = vunpack.c.l.b16 %v109
    %v159 = vunpack.c.h.b16 %v109
    %v160 = vunpack.c.l.b16 %v110
    %v161 = vunpack.c.h.b16 %v110
    %v162 = vunpack.c.l.b16 %v111
    %v163 = vunpack.c.h.b16 %v111
    %v164 = vunpack.c.l.b16 %v112
    %v165 = vunpack.c.h.b16 %v112
    %v166 = vunpack.c.l.b16 %v113
    %v167 = vunpack.c.h.b16 %v113
    %v168 = vpack.c.b16 %v138, %v136
    %v169 = vpack.c.b16 %v139, %v137
    %v170 = vpack.c.b16 %v142, %v140
    %v171 = vpack.c.b16 %v143, %v141
    %v172 = vpack.c.b16 %v146, %v144
    %v173 = vpack.c.b16 %v147, %v145
    %v174 = vpack.c.b16 %v150, %v148
    %v175 = vpack.c.b16 %v151, %v149
    %v176 = vpack.c.b16 %v154, %v152
    %v177 = vpack.c.b16 %v155, %v153
    %v178 = vpack.c.b16 %v158, %v156
    %v179 = vpack.c.b16 %v159, %v157
    %v180 = vpack.c.b16 %v162, %v160
    %v181 = vpack.c.b16 %v163, %v161
    %v182 = vpack.c.b16 %v166, %v164
    %v183 = vpack.c.b16 %v167, %v165
    %200 = vmatpush.bf16.msra.mxu0 %v182
    %201 = vmatpush.bf16.msra.mxu0 %v180
    %202 = vmatpush.bf16.msra.mxu0 %v178
    %203 = vmatpush.bf16.msra.mxu0 %v176
    %204 = vmatpush.bf16.msra.mxu0 %v174
    %205 = vmatpush.bf16.msra.mxu0 %v172
    %206 = vmatpush.bf16.msra.mxu0 %v170
    %207 = vmatpush.bf16.msra.mxu0 %v168
    %208 = vmatmul.bf16.gmra.mxu0 %v97
    %v209 = vpop.f32.mrf.mxu0
    %v210 = vadd.f32 %v116, %v209
    %v211 = vpop.f32.mrf.mxu0
    %v212 = vadd.f32 %v116, %v211
    %213 = vdwg.mxu0
    %214 = vmatpush.bf16.msra.mxu0 %v183
    %215 = vmatpush.bf16.msra.mxu0 %v181
    %216 = vmatpush.bf16.msra.mxu0 %v179
    %217 = vmatpush.bf16.msra.mxu0 %v177
    %218 = vmatpush.bf16.msra.mxu0 %v175
    %219 = vmatpush.bf16.msra.mxu0 %v173
    %220 = vmatpush.bf16.msra.mxu0 %v171
    %221 = vmatpush.bf16.msra.mxu0 %v169
    %222 = vmatmul.bf16.gmra.mxu0 %v97
    %v223 = vpop.f32.mrf.mxu0
    %v224 = vadd.f32 %v117, %v223
    %v225 = vpop.f32.mrf.mxu0
    %v226 = vadd.f32 %v117, %v225
    %227 = vdwg.mxu0
    %v228 = vmax.f32 %v210, 0.0
    %v229 = vmax.f32 %v224, 0.0
    %v230 = vmax.f32 %v212, 0.0
    %v231 = vmax.f32 %v226, 0.0
    %v232 = vpack.c.bf16 %v230, %v228
    %v233 = vpack.c.bf16 %v231, %v229
    %v234 = vld [vmem:[#allocation8] sm:$0xff]
    %v235 = vld [vmem:[#allocation8 + $0x8] sm:$0xff]
    %v236 = vld [vmem:[#allocation8 + $0x10] sm:$0xff]
    %v237 = vld [vmem:[#allocation8 + $0x18] sm:$0xf]
    %v238 = vld [vmem:[#allocation8 + $0x1c] sm:$0xff]
    %v239 = vld [vmem:[#allocation8 + $0x24] sm:$0xff]
    %v240 = vld [vmem:[#allocation8 + $0x2c] sm:$0xff]
    %v241 = vld [vmem:[#allocation8 + $0x34] sm:$0xf]
    %v242 = vld [vmem:[#allocation8 + $0x38] sm:$0xff]
    %v243 = vld [vmem:[#allocation8 + $0x40] sm:$0xff]
    %v244 = vld [vmem:[#allocation8 + $0x48] sm:$0xff]
    %v245 = vld [vmem:[#allocation8 + $0x50] sm:$0xf]
    %v246 = vld [vmem:[#allocation8 + $0x54] sm:$0xff]
    %v247 = vld [vmem:[#allocation8 + $0x5c] sm:$0xff]
    %v248 = vld [vmem:[#allocation8 + $0x64] sm:$0xff]
    %v249 = vld [vmem:[#allocation8 + $0x6c] sm:$0xf]
    %v250 = vld [vmem:[#allocation8 + $0x70] sm:$0xff]
    %v251 = vld [vmem:[#allocation8 + $0x78] sm:$0xff]
    %v252 = vld [vmem:[#allocation8 + $0x80] sm:$0xff]
    %v253 = vld [vmem:[#allocation8 + $0x88] sm:$0xf]
    %v254 = vld [vmem:[#allocation8 + $0x8c] sm:$0xff]
    %v255 = vld [vmem:[#allocation8 + $0x94] sm:$0xff]
    %v256 = vld [vmem:[#allocation8 + $0x9c] sm:$0xff]
    %v257 = vld [vmem:[#allocation8 + $0xa4] sm:$0xf]
    %v258 = vld [vmem:[#allocation8 + $0xa8] sm:$0xff]
    %v259 = vld [vmem:[#allocation8 + $0xb0] sm:$0xff]
    %v260 = vld [vmem:[#allocation8 + $0xb8] sm:$0xff]
    %v261 = vld [vmem:[#allocation8 + $0xc0] sm:$0xf]
    %v262 = vld [vmem:[#allocation8 + $0xc4] sm:$0xff]
    %v263 = vld [vmem:[#allocation8 + $0xcc] sm:$0xff]
    %v264 = vld [vmem:[#allocation8 + $0xd4] sm:$0xff]
    %v265 = vld [vmem:[#allocation8 + $0xdc] sm:$0xf]
    %v266 = vld [vmem:[#allocation8 + $0xe0] sm:$0xff]
    %v267 = vld [vmem:[#allocation8 + $0xe8] sm:$0xff]
    %v268 = vld [vmem:[#allocation8 + $0xf0] sm:$0xff]
    %v269 = vld [vmem:[#allocation8 + $0xf8] sm:$0xf]
    %v270 = vld [vmem:[#allocation8 + $0xfc] sm:$0xff]
    %v271 = vld [vmem:[#allocation8 + $0x104] sm:$0xff]
    %v272 = vld [vmem:[#allocation8 + $0x10c] sm:$0xff]
    %v273 = vld [vmem:[#allocation8 + $0x114] sm:$0xf]
    %v274 = vld [vmem:[#allocation8 + $0x118] sm:$0xff]
    %v275 = vld [vmem:[#allocation8 + $0x120] sm:$0xff]
    %v276 = vld [vmem:[#allocation8 + $0x128] sm:$0xff]
    %v277 = vld [vmem:[#allocation8 + $0x130] sm:$0xf]
    %v278 = vld [vmem:[#allocation8 + $0x134] sm:$0xff]
    %v279 = vld [vmem:[#allocation8 + $0x13c] sm:$0xff]
    %v280 = vld [vmem:[#allocation8 + $0x144] sm:$0xff]
    %v281 = vld [vmem:[#allocation8 + $0x14c] sm:$0xf]
    %v282 = vld [vmem:[#allocation8 + $0x150] sm:$0xff]
    %v283 = vld [vmem:[#allocation8 + $0x158] sm:$0xff]
    %v284 = vld [vmem:[#allocation8 + $0x160] sm:$0xff]
    %v285 = vld [vmem:[#allocation8 + $0x168] sm:$0xf]
    %v286 = vld [vmem:[#allocation8 + $0x16c] sm:$0xff]
    %v287 = vld [vmem:[#allocation8 + $0x174] sm:$0xff]
    %v288 = vld [vmem:[#allocation8 + $0x17c] sm:$0xff]
    %v289 = vld [vmem:[#allocation8 + $0x184] sm:$0xf]
    %v290 = vld [vmem:[#allocation8 + $0x188] sm:$0xff]
    %v291 = vld [vmem:[#allocation8 + $0x190] sm:$0xff]
    %v292 = vld [vmem:[#allocation8 + $0x198] sm:$0xff]
    %v293 = vld [vmem:[#allocation8 + $0x1a0] sm:$0xf]
    %v294 = vld [vmem:[#allocation8 + $0x1a4] sm:$0xff]
    %v295 = vld [vmem:[#allocation8 + $0x1ac] sm:$0xff]
    %v296 = vld [vmem:[#allocation8 + $0x1b4] sm:$0xff]
    %v297 = vld [vmem:[#allocation8 + $0x1bc] sm:$0xf]
    %v298 = vld [vmem:[#allocation8 + $0x1c0] sm:$0xff]
    %v299 = vld [vmem:[#allocation8 + $0x1c8] sm:$0xff]
    %v300 = vld [vmem:[#allocation8 + $0x1d0] sm:$0xff]
    %v301 = vld [vmem:[#allocation8 + $0x1d8] sm:$0xf]
    %v302 = vld [vmem:[#allocation8 + $0x1dc] sm:$0xff]
    %v303 = vld [vmem:[#allocation8 + $0x1e4] sm:$0xff]
    %v304 = vld [vmem:[#allocation8 + $0x1ec] sm:$0xff]
    %v305 = vld [vmem:[#allocation8 + $0x1f4] sm:$0xf]
    %v306 = vld [vmem:[#allocation8 + $0x1f8] sm:$0xff]
    %v307 = vld [vmem:[#allocation8 + $0x200] sm:$0xff]
    %v308 = vld [vmem:[#allocation8 + $0x208] sm:$0xff]
    %v309 = vld [vmem:[#allocation8 + $0x210] sm:$0xf]
    %v310 = vld [vmem:[#allocation8 + $0x214] sm:$0xff]
    %v311 = vld [vmem:[#allocation8 + $0x21c] sm:$0xff]
    %v312 = vld [vmem:[#allocation8 + $0x224] sm:$0xff]
    %v313 = vld [vmem:[#allocation8 + $0x22c] sm:$0xf]
    %v314 = vld [vmem:[#allocation8 + $0x230] sm:$0xff]
    %v315 = vld [vmem:[#allocation8 + $0x238] sm:$0xff]
    %v316 = vld [vmem:[#allocation8 + $0x240] sm:$0xff]
    %v317 = vld [vmem:[#allocation8 + $0x248] sm:$0xf]
    %v318 = vld [vmem:[#allocation8 + $0x24c] sm:$0xff]
    %v319 = vld [vmem:[#allocation8 + $0x254] sm:$0xff]
    %v320 = vld [vmem:[#allocation8 + $0x25c] sm:$0xff]
    %v321 = vld [vmem:[#allocation8 + $0x264] sm:$0xf]
    %v322 = vld [vmem:[#allocation8 + $0x268] sm:$0xff]
    %v323 = vld [vmem:[#allocation8 + $0x270] sm:$0xff]
    %v324 = vld [vmem:[#allocation8 + $0x278] sm:$0xff]
    %v325 = vld [vmem:[#allocation8 + $0x280] sm:$0xf]
    %v326 = vld [vmem:[#allocation8 + $0x284] sm:$0xff]
    %v327 = vld [vmem:[#allocation8 + $0x28c] sm:$0xff]
    %v328 = vld [vmem:[#allocation8 + $0x294] sm:$0xff]
    %v329 = vld [vmem:[#allocation8 + $0x29c] sm:$0xf]
    %v330 = vld [vmem:[#allocation8 + $0x2a0] sm:$0xff]
    %v331 = vld [vmem:[#allocation8 + $0x2a8] sm:$0xff]
    %v332 = vld [vmem:[#allocation8 + $0x2b0] sm:$0xff]
    %v333 = vld [vmem:[#allocation8 + $0x2b8] sm:$0xf]
    %v334 = vld [vmem:[#allocation8 + $0x2bc] sm:$0xff]
    %v335 = vld [vmem:[#allocation8 + $0x2c4] sm:$0xff]
    %v336 = vld [vmem:[#allocation8 + $0x2cc] sm:$0xff]
    %v337 = vld [vmem:[#allocation8 + $0x2d4] sm:$0xf]
    %v338 = vld [vmem:[#allocation8 + $0x2d8] sm:$0xff]
    %v339 = vld [vmem:[#allocation8 + $0x2e0] sm:$0xff]
    %v340 = vld [vmem:[#allocation8 + $0x2e8] sm:$0xff]
    %v341 = vld [vmem:[#allocation8 + $0x2f0] sm:$0xf]
    %v342 = vld [vmem:[#allocation8 + $0x2f4] sm:$0xff]
    %v343 = vld [vmem:[#allocation8 + $0x2fc] sm:$0xff]
    %v344 = vld [vmem:[#allocation8 + $0x304] sm:$0xff]
    %v345 = vld [vmem:[#allocation8 + $0x30c] sm:$0xf]
    %v346 = vld [vmem:[#allocation8 + $0x310] sm:$0xff]
    %v347 = vld [vmem:[#allocation8 + $0x318] sm:$0xff]
    %v348 = vld [vmem:[#allocation8 + $0x320] sm:$0xff]
    %v349 = vld [vmem:[#allocation8 + $0x328] sm:$0xf]
    %v350 = vld [vmem:[#allocation8 + $0x32c] sm:$0xff]
    %v351 = vld [vmem:[#allocation8 + $0x334] sm:$0xff]
    %v352 = vld [vmem:[#allocation8 + $0x33c] sm:$0xff]
    %v353 = vld [vmem:[#allocation8 + $0x344] sm:$0xf]
    %v354 = vld [vmem:[#allocation8 + $0x348] sm:$0xff]
    %v355 = vld [vmem:[#allocation8 + $0x350] sm:$0xff]
    %v356 = vld [vmem:[#allocation8 + $0x358] sm:$0xff]
    %v357 = vld [vmem:[#allocation8 + $0x360] sm:$0xf]
    %v358 = vld [vmem:[#allocation8 + $0x364] sm:$0xff]
    %v359 = vld [vmem:[#allocation8 + $0x36c] sm:$0xff]
    %v360 = vld [vmem:[#allocation8 + $0x374] sm:$0xff]
    %v361 = vld [vmem:[#allocation8 + $0x37c] sm:$0xf]
    %v490 = vunpack.c.l.b16 %v234
    %v491 = vunpack.c.h.b16 %v234
    %v492 = vunpack.c.l.b16 %v235
    %v493 = vunpack.c.h.b16 %v235
    %v494 = vunpack.c.l.b16 %v236
    %v495 = vunpack.c.h.b16 %v236
    %v496 = vunpack.c.l.b16 %v237
    %v497 = vunpack.c.l.b16 %v238
    %v498 = vunpack.c.h.b16 %v238
    %v499 = vunpack.c.l.b16 %v239
    %v500 = vunpack.c.h.b16 %v239
    %v501 = vunpack.c.l.b16 %v240
    %v502 = vunpack.c.h.b16 %v240
    %v503 = vunpack.c.l.b16 %v241
    %v504 = vunpack.c.l.b16 %v242
    %v505 = vunpack.c.h.b16 %v242
    %v506 = vunpack.c.l.b16 %v243
    %v507 = vunpack.c.h.b16 %v243
    %v508 = vunpack.c.l.b16 %v244
    %v509 = vunpack.c.h.b16 %v244
    %v510 = vunpack.c.l.b16 %v245
    %v511 = vunpack.c.l.b16 %v246
    %v512 = vunpack.c.h.b16 %v246
    %v513 = vunpack.c.l.b16 %v247
    %v514 = vunpack.c.h.b16 %v247
    %v515 = vunpack.c.l.b16 %v248
    %v516 = vunpack.c.h.b16 %v248
    %v517 = vunpack.c.l.b16 %v249
    %v518 = vunpack.c.l.b16 %v250
    %v519 = vunpack.c.h.b16 %v250
    %v520 = vunpack.c.l.b16 %v251
    %v521 = vunpack.c.h.b16 %v251
    %v522 = vunpack.c.l.b16 %v252
    %v523 = vunpack.c.h.b16 %v252
    %v524 = vunpack.c.l.b16 %v253
    %v525 = vunpack.c.l.b16 %v254
    %v526 = vunpack.c.h.b16 %v254
    %v527 = vunpack.c.l.b16 %v255
    %v528 = vunpack.c.h.b16 %v255
    %v529 = vunpack.c.l.b16 %v256
    %v530 = vunpack.c.h.b16 %v256
    %v531 = vunpack.c.l.b16 %v257
    %v532 = vunpack.c.l.b16 %v258
    %v533 = vunpack.c.h.b16 %v258
    %v534 = vunpack.c.l.b16 %v259
    %v535 = vunpack.c.h.b16 %v259
    %v536 = vunpack.c.l.b16 %v260
    %v537 = vunpack.c.h.b16 %v260
    %v538 = vunpack.c.l.b16 %v261
    %v539 = vunpack.c.l.b16 %v262
    %v540 = vunpack.c.h.b16 %v262
    %v541 = vunpack.c.l.b16 %v263
    %v542 = vunpack.c.h.b16 %v263
    %v543 = vunpack.c.l.b16 %v264
    %v544 = vunpack.c.h.b16 %v264
    %v545 = vunpack.c.l.b16 %v265
    %v546 = vunpack.c.l.b16 %v266
    %v547 = vunpack.c.h.b16 %v266
    %v548 = vunpack.c.l.b16 %v267
    %v549 = vunpack.c.h.b16 %v267
    %v550 = vunpack.c.l.b16 %v268
    %v551 = vunpack.c.h.b16 %v268
    %v552 = vunpack.c.l.b16 %v269
    %v553 = vunpack.c.l.b16 %v270
    %v554 = vunpack.c.h.b16 %v270
    %v555 = vunpack.c.l.b16 %v271
    %v556 = vunpack.c.h.b16 %v271
    %v557 = vunpack.c.l.b16 %v272
    %v558 = vunpack.c.h.b16 %v272
    %v559 = vunpack.c.l.b16 %v273
    %v560 = vunpack.c.l.b16 %v274
    %v561 = vunpack.c.h.b16 %v274
    %v562 = vunpack.c.l.b16 %v275
    %v563 = vunpack.c.h.b16 %v275
    %v564 = vunpack.c.l.b16 %v276
    %v565 = vunpack.c.h.b16 %v276
    %v566 = vunpack.c.l.b16 %v277
    %v567 = vunpack.c.l.b16 %v278
    %v568 = vunpack.c.h.b16 %v278
    %v569 = vunpack.c.l.b16 %v279
    %v570 = vunpack.c.h.b16 %v279
    %v571 = vunpack.c.l.b16 %v280
    %v572 = vunpack.c.h.b16 %v280
    %v573 = vunpack.c.l.b16 %v281
    %v574 = vunpack.c.l.b16 %v282
    %v575 = vunpack.c.h.b16 %v282
    %v576 = vunpack.c.l.b16 %v283
    %v577 = vunpack.c.h.b16 %v283
    %v578 = vunpack.c.l.b16 %v284
    %v579 = vunpack.c.h.b16 %v284
    %v580 = vunpack.c.l.b16 %v285
    %v581 = vunpack.c.l.b16 %v286
    %v582 = vunpack.c.h.b16 %v286
    %v583 = vunpack.c.l.b16 %v287
    %v584 = vunpack.c.h.b16 %v287
    %v585 = vunpack.c.l.b16 %v288
    %v586 = vunpack.c.h.b16 %v288
    %v587 = vunpack.c.l.b16 %v289
    %v588 = vunpack.c.l.b16 %v290
    %v589 = vunpack.c.h.b16 %v290
    %v590 = vunpack.c.l.b16 %v291
    %v591 = vunpack.c.h.b16 %v291
    %v592 = vunpack.c.l.b16 %v292
    %v593 = vunpack.c.h.b16 %v292
    %v594 = vunpack.c.l.b16 %v293
    %v595 = vunpack.c.l.b16 %v294
    %v596 = vunpack.c.h.b16 %v294
    %v597 = vunpack.c.l.b16 %v295
    %v598 = vunpack.c.h.b16 %v295
    %v599 = vunpack.c.l.b16 %v296
    %v600 = vunpack.c.h.b16 %v296
    %v601 = vunpack.c.l.b16 %v297
    %v602 = vunpack.c.l.b16 %v298
    %v603 = vunpack.c.h.b16 %v298
    %v604 = vunpack.c.l.b16 %v299
    %v605 = vunpack.c.h.b16 %v299
    %v606 = vunpack.c.l.b16 %v300
    %v607 = vunpack.c.h.b16 %v300
    %v608 = vunpack.c.l.b16 %v301
    %v609 = vunpack.c.l.b16 %v302
    %v610 = vunpack.c.h.b16 %v302
    %v611 = vunpack.c.l.b16 %v303
    %v612 = vunpack.c.h.b16 %v303
    %v613 = vunpack.c.l.b16 %v304
    %v614 = vunpack.c.h.b16 %v304
    %v615 = vunpack.c.l.b16 %v305
    %v616 = vunpack.c.l.b16 %v306
    %v617 = vunpack.c.h.b16 %v306
    %v618 = vunpack.c.l.b16 %v307
    %v619 = vunpack.c.h.b16 %v307
    %v620 = vunpack.c.l.b16 %v308
    %v621 = vunpack.c.h.b16 %v308
    %v622 = vunpack.c.l.b16 %v309
    %v623 = vunpack.c.l.b16 %v310
    %v624 = vunpack.c.h.b16 %v310
    %v625 = vunpack.c.l.b16 %v311
    %v626 = vunpack.c.h.b16 %v311
    %v627 = vunpack.c.l.b16 %v312
    %v628 = vunpack.c.h.b16 %v312
    %v629 = vunpack.c.l.b16 %v313
    %v630 = vunpack.c.l.b16 %v314
    %v631 = vunpack.c.h.b16 %v314
    %v632 = vunpack.c.l.b16 %v315
    %v633 = vunpack.c.h.b16 %v315
    %v634 = vunpack.c.l.b16 %v316
    %v635 = vunpack.c.h.b16 %v316
    %v636 = vunpack.c.l.b16 %v317
    %v637 = vunpack.c.l.b16 %v318
    %v638 = vunpack.c.h.b16 %v318
    %v639 = vunpack.c.l.b16 %v319
    %v640 = vunpack.c.h.b16 %v319
    %v641 = vunpack.c.l.b16 %v320
    %v642 = vunpack.c.h.b16 %v320
    %v643 = vunpack.c.l.b16 %v321
    %v644 = vunpack.c.l.b16 %v322
    %v645 = vunpack.c.h.b16 %v322
    %v646 = vunpack.c.l.b16 %v323
    %v647 = vunpack.c.h.b16 %v323
    %v648 = vunpack.c.l.b16 %v324
    %v649 = vunpack.c.h.b16 %v324
    %v650 = vunpack.c.l.b16 %v325
    %v651 = vunpack.c.l.b16 %v326
    %v652 = vunpack.c.h.b16 %v326
    %v653 = vunpack.c.l.b16 %v327
    %v654 = vunpack.c.h.b16 %v327
    %v655 = vunpack.c.l.b16 %v328
    %v656 = vunpack.c.h.b16 %v328
    %v657 = vunpack.c.l.b16 %v329
    %v658 = vunpack.c.l.b16 %v330
    %v659 = vunpack.c.h.b16 %v330
    %v660 = vunpack.c.l.b16 %v331
    %v661 = vunpack.c.h.b16 %v331
    %v662 = vunpack.c.l.b16 %v332
    %v663 = vunpack.c.h.b16 %v332
    %v664 = vunpack.c.l.b16 %v333
    %v665 = vunpack.c.l.b16 %v334
    %v666 = vunpack.c.h.b16 %v334
    %v667 = vunpack.c.l.b16 %v335
    %v668 = vunpack.c.h.b16 %v335
    %v669 = vunpack.c.l.b16 %v336
    %v670 = vunpack.c.h.b16 %v336
    %v671 = vunpack.c.l.b16 %v337
    %v672 = vunpack.c.l.b16 %v338
    %v673 = vunpack.c.h.b16 %v338
    %v674 = vunpack.c.l.b16 %v339
    %v675 = vunpack.c.h.b16 %v339
    %v676 = vunpack.c.l.b16 %v340
    %v677 = vunpack.c.h.b16 %v340
    %v678 = vunpack.c.l.b16 %v341
    %v679 = vunpack.c.l.b16 %v342
    %v680 = vunpack.c.h.b16 %v342
    %v681 = vunpack.c.l.b16 %v343
    %v682 = vunpack.c.h.b16 %v343
    %v683 = vunpack.c.l.b16 %v344
    %v684 = vunpack.c.h.b16 %v344
    %v685 = vunpack.c.l.b16 %v345
    %v686 = vunpack.c.l.b16 %v346
    %v687 = vunpack.c.h.b16 %v346
    %v688 = vunpack.c.l.b16 %v347
    %v689 = vunpack.c.h.b16 %v347
    %v690 = vunpack.c.l.b16 %v348
    %v691 = vunpack.c.h.b16 %v348
    %v692 = vunpack.c.l.b16 %v349
    %v693 = vunpack.c.l.b16 %v350
    %v694 = vunpack.c.h.b16 %v350
    %v695 = vunpack.c.l.b16 %v351
    %v696 = vunpack.c.h.b16 %v351
    %v697 = vunpack.c.l.b16 %v352
    %v698 = vunpack.c.h.b16 %v352
    %v699 = vunpack.c.l.b16 %v353
    %v700 = vunpack.c.l.b16 %v354
    %v701 = vunpack.c.h.b16 %v354
    %v702 = vunpack.c.l.b16 %v355
    %v703 = vunpack.c.h.b16 %v355
    %v704 = vunpack.c.l.b16 %v356
    %v705 = vunpack.c.h.b16 %v356
    %v706 = vunpack.c.l.b16 %v357
    %v707 = vunpack.c.l.b16 %v358
    %v708 = vunpack.c.h.b16 %v358
    %v709 = vunpack.c.l.b16 %v359
    %v710 = vunpack.c.h.b16 %v359
    %v711 = vunpack.c.l.b16 %v360
    %v712 = vunpack.c.h.b16 %v360
    %v713 = vunpack.c.l.b16 %v361
    %v714 = vpack.c.b16 %v497, %v490
    %v715 = vpack.c.b16 %v498, %v491
    %v716 = vpack.c.b16 %v499, %v492
    %v717 = vpack.c.b16 %v500, %v493
    %v718 = vpack.c.b16 %v501, %v494
    %v719 = vpack.c.b16 %v502, %v495
    %v720 = vpack.c.b16 %v503, %v496
    %v721 = vpack.c.b16 %v511, %v504
    %v722 = vpack.c.b16 %v512, %v505
    %v723 = vpack.c.b16 %v513, %v506
    %v724 = vpack.c.b16 %v514, %v507
    %v725 = vpack.c.b16 %v515, %v508
    %v726 = vpack.c.b16 %v516, %v509
    %v727 = vpack.c.b16 %v517, %v510
    %v728 = vpack.c.b16 %v525, %v518
    %v729 = vpack.c.b16 %v526, %v519
    %v730 = vpack.c.b16 %v527, %v520
    %v731 = vpack.c.b16 %v528, %v521
    %v732 = vpack.c.b16 %v529, %v522
    %v733 = vpack.c.b16 %v530, %v523
    %v734 = vpack.c.b16 %v531, %v524
    %v735 = vpack.c.b16 %v539, %v532
    %v736 = vpack.c.b16 %v540, %v533
    %v737 = vpack.c.b16 %v541, %v534
    %v738 = vpack.c.b16 %v542, %v535
    %v739 = vpack.c.b16 %v543, %v536
    %v740 = vpack.c.b16 %v544, %v537
    %v741 = vpack.c.b16 %v545, %v538
    %v742 = vpack.c.b16 %v553, %v546
    %v743 = vpack.c.b16 %v554, %v547
    %v744 = vpack.c.b16 %v555, %v548
    %v745 = vpack.c.b16 %v556, %v549
    %v746 = vpack.c.b16 %v557, %v550
    %v747 = vpack.c.b16 %v558, %v551
    %v748 = vpack.c.b16 %v559, %v552
    %v749 = vpack.c.b16 %v567, %v560
    %v750 = vpack.c.b16 %v568, %v561
    %v751 = vpack.c.b16 %v569, %v562
    %v752 = vpack.c.b16 %v570, %v563
    %v753 = vpack.c.b16 %v571, %v564
    %v754 = vpack.c.b16 %v572, %v565
    %v755 = vpack.c.b16 %v573, %v566
    %v756 = vpack.c.b16 %v581, %v574
    %v757 = vpack.c.b16 %v582, %v575
    %v758 = vpack.c.b16 %v583, %v576
    %v759 = vpack.c.b16 %v584, %v577
    %v760 = vpack.c.b16 %v585, %v578
    %v761 = vpack.c.b16 %v586, %v579
    %v762 = vpack.c.b16 %v587, %v580
    %v763 = vpack.c.b16 %v595, %v588
    %v764 = vpack.c.b16 %v596, %v589
    %v765 = vpack.c.b16 %v597, %v590
    %v766 = vpack.c.b16 %v598, %v591
    %v767 = vpack.c.b16 %v599, %v592
    %v768 = vpack.c.b16 %v600, %v593
    %v769 = vpack.c.b16 %v601, %v594
    %v770 = vpack.c.b16 %v609, %v602
    %v771 = vpack.c.b16 %v610, %v603
    %v772 = vpack.c.b16 %v611, %v604
    %v773 = vpack.c.b16 %v612, %v605
    %v774 = vpack.c.b16 %v613, %v606
    %v775 = vpack.c.b16 %v614, %v607
    %v776 = vpack.c.b16 %v615, %v608
    %v777 = vpack.c.b16 %v623, %v616
    %v778 = vpack.c.b16 %v624, %v617
    %v779 = vpack.c.b16 %v625, %v618
    %v780 = vpack.c.b16 %v626, %v619
    %v781 = vpack.c.b16 %v627, %v620
    %v782 = vpack.c.b16 %v628, %v621
    %v783 = vpack.c.b16 %v629, %v622
    %v784 = vpack.c.b16 %v637, %v630
    %v785 = vpack.c.b16 %v638, %v631
    %v786 = vpack.c.b16 %v639, %v632
    %v787 = vpack.c.b16 %v640, %v633
    %v788 = vpack.c.b16 %v641, %v634
    %v789 = vpack.c.b16 %v642, %v635
    %v790 = vpack.c.b16 %v643, %v636
    %v791 = vpack.c.b16 %v651, %v644
    %v792 = vpack.c.b16 %v652, %v645
    %v793 = vpack.c.b16 %v653, %v646
    %v794 = vpack.c.b16 %v654, %v647
    %v795 = vpack.c.b16 %v655, %v648
    %v796 = vpack.c.b16 %v656, %v649
    %v797 = vpack.c.b16 %v657, %v650
    %v798 = vpack.c.b16 %v665, %v658
    %v799 = vpack.c.b16 %v666, %v659
    %v800 = vpack.c.b16 %v667, %v660
    %v801 = vpack.c.b16 %v668, %v661
    %v802 = vpack.c.b16 %v669, %v662
    %v803 = vpack.c.b16 %v670, %v663
    %v804 = vpack.c.b16 %v671, %v664
    %v805 = vpack.c.b16 %v679, %v672
    %v806 = vpack.c.b16 %v680, %v673
    %v807 = vpack.c.b16 %v681, %v674
    %v808 = vpack.c.b16 %v682, %v675
    %v809 = vpack.c.b16 %v683, %v676
    %v810 = vpack.c.b16 %v684, %v677
    %v811 = vpack.c.b16 %v685, %v678
    %v812 = vpack.c.b16 %v693, %v686
    %v813 = vpack.c.b16 %v694, %v687
    %v814 = vpack.c.b16 %v695, %v688
    %v815 = vpack.c.b16 %v696, %v689
    %v816 = vpack.c.b16 %v697, %v690
    %v817 = vpack.c.b16 %v698, %v691
    %v818 = vpack.c.b16 %v699, %v692
    %v819 = vpack.c.b16 %v707, %v700
    %v820 = vpack.c.b16 %v708, %v701
    %v821 = vpack.c.b16 %v709, %v702
    %v822 = vpack.c.b16 %v710, %v703
    %v823 = vpack.c.b16 %v711, %v704
    %v824 = vpack.c.b16 %v712, %v705
    %v825 = vpack.c.b16 %v713, %v706
    %938 = vmatpush.bf16.msra.mxu0 %v763
    %939 = vmatpush.bf16.msra.mxu0 %v756
    %940 = vmatpush.bf16.msra.mxu0 %v749
    %941 = vmatpush.bf16.msra.mxu0 %v742
    %942 = vmatpush.bf16.msra.mxu0 %v735
    %943 = vmatpush.bf16.msra.mxu0 %v728
    %944 = vmatpush.bf16.msra.mxu0 %v721
    %945 = vmatpush.bf16.msra.mxu0 %v714
    %946 = vmatmul.bf16.gmra.mxu0 %v232
    %v947 = vpop.f32.mrf.mxu0
    %v948 = vadd.f32 0.0, %v947
    %v949 = vpop.f32.mrf.mxu0
    %v950 = vadd.f32 0.0, %v949
    %951 = vdwg.mxu0
    %952 = vmatpush.bf16.msra.mxu0 %v819
    %953 = vmatpush.bf16.msra.mxu0 %v812
    %954 = vmatpush.bf16.msra.mxu0 %v805
    %955 = vmatpush.bf16.msra.mxu0 %v798
    %956 = vmatpush.bf16.msra.mxu0 %v791
    %957 = vmatpush.bf16.msra.mxu0 %v784
    %958 = vmatpush.bf16.msra.mxu0 %v777
    %959 = vmatpush.bf16.msra.mxu0 %v770
    %960 = vmatmul.bf16.gmra.mxu0 %v233
    %v961 = vpop.f32.mrf.mxu0
    %v962 = vadd.f32 %v948, %v961
    %v963 = vpop.f32.mrf.mxu0
    %v964 = vadd.f32 %v950, %v963
    %965 = vdwg.mxu0
    %966 = vmatpush.bf16.msra.mxu0 %v764
    %967 = vmatpush.bf16.msra.mxu0 %v757
    %968 = vmatpush.bf16.msra.mxu0 %v750
    %969 = vmatpush.bf16.msra.mxu0 %v743
    %970 = vmatpush.bf16.msra.mxu0 %v736
    %971 = vmatpush.bf16.msra.mxu0 %v729
    %972 = vmatpush.bf16.msra.mxu0 %v722
    %973 = vmatpush.bf16.msra.mxu0 %v715
    %974 = vmatmul.bf16.gmra.mxu0 %v232
    %v975 = vpop.f32.mrf.mxu0
    %v976 = vadd.f32 0.0, %v975
    %v977 = vpop.f32.mrf.mxu0
    %v978 = vadd.f32 0.0, %v977
    %979 = vdwg.mxu0
    %980 = vmatpush.bf16.msra.mxu0 %v820
    %981 = vmatpush.bf16.msra.mxu0 %v813
    %982 = vmatpush.bf16.msra.mxu0 %v806
    %983 = vmatpush.bf16.msra.mxu0 %v799
    %984 = vmatpush.bf16.msra.mxu0 %v792
    %985 = vmatpush.bf16.msra.mxu0 %v785
    %986 = vmatpush.bf16.msra.mxu0 %v778
    %987 = vmatpush.bf16.msra.mxu0 %v771
    %988 = vmatmul.bf16.gmra.mxu0 %v233
    %v989 = vpop.f32.mrf.mxu0
    %v990 = vadd.f32 %v976, %v989
    %v991 = vpop.f32.mrf.mxu0
    %v992 = vadd.f32 %v978, %v991
    %993 = vdwg.mxu0
    %994 = vmatpush.bf16.msra.mxu0 %v765
    %995 = vmatpush.bf16.msra.mxu0 %v758
    %996 = vmatpush.bf16.msra.mxu0 %v751
    %997 = vmatpush.bf16.msra.mxu0 %v744
    %998 = vmatpush.bf16.msra.mxu0 %v737
    %999 = vmatpush.bf16.msra.mxu0 %v730
    %1000 = vmatpush.bf16.msra.mxu0 %v723
    %1001 = vmatpush.bf16.msra.mxu0 %v716
    %1002 = vmatmul.bf16.gmra.mxu0 %v232
    %v1003 = vpop.f32.mrf.mxu0
    %v1004 = vadd.f32 0.0, %v1003
    %v1005 = vpop.f32.mrf.mxu0
    %v1006 = vadd.f32 0.0, %v1005
    %1007 = vdwg.mxu0
    %1008 = vmatpush.bf16.msra.mxu0 %v821
    %1009 = vmatpush.bf16.msra.mxu0 %v814
    %1010 = vmatpush.bf16.msra.mxu0 %v807
    %1011 = vmatpush.bf16.msra.mxu0 %v800
    %1012 = vmatpush.bf16.msra.mxu0 %v793
    %1013 = vmatpush.bf16.msra.mxu0 %v786
    %1014 = vmatpush.bf16.msra.mxu0 %v779
    %1015 = vmatpush.bf16.msra.mxu0 %v772
    %1016 = vmatmul.bf16.gmra.mxu0 %v233
    %v1017 = vpop.f32.mrf.mxu0
    %v1018 = vadd.f32 %v1004, %v1017
    %v1019 = vpop.f32.mrf.mxu0
    %v1020 = vadd.f32 %v1006, %v1019
    %1021 = vdwg.mxu0
    %1022 = vmatpush.bf16.msra.mxu0 %v766
    %1023 = vmatpush.bf16.msra.mxu0 %v759
    %1024 = vmatpush.bf16.msra.mxu0 %v752
    %1025 = vmatpush.bf16.msra.mxu0 %v745
    %1026 = vmatpush.bf16.msra.mxu0 %v738
    %1027 = vmatpush.bf16.msra.mxu0 %v731
    %1028 = vmatpush.bf16.msra.mxu0 %v724
    %1029 = vmatpush.bf16.msra.mxu0 %v717
    %1030 = vmatmul.bf16.gmra.mxu0 %v232
    %v1031 = vpop.f32.mrf.mxu0
    %v1032 = vadd.f32 0.0, %v1031
    %v1033 = vpop.f32.mrf.mxu0
    %v1034 = vadd.f32 0.0, %v1033
    %1035 = vdwg.mxu0
    %1036 = vmatpush.bf16.msra.mxu0 %v822
    %1037 = vmatpush.bf16.msra.mxu0 %v815
    %1038 = vmatpush.bf16.msra.mxu0 %v808
    %1039 = vmatpush.bf16.msra.mxu0 %v801
    %1040 = vmatpush.bf16.msra.mxu0 %v794
    %1041 = vmatpush.bf16.msra.mxu0 %v787
    %1042 = vmatpush.bf16.msra.mxu0 %v780
    %1043 = vmatpush.bf16.msra.mxu0 %v773
    %1044 = vmatmul.bf16.gmra.mxu0 %v233
    %v1045 = vpop.f32.mrf.mxu0
    %v1046 = vadd.f32 %v1032, %v1045
    %v1047 = vpop.f32.mrf.mxu0
    %v1048 = vadd.f32 %v1034, %v1047
    %1049 = vdwg.mxu0
    %1050 = vmatpush.bf16.msra.mxu0 %v767
    %1051 = vmatpush.bf16.msra.mxu0 %v760
    %1052 = vmatpush.bf16.msra.mxu0 %v753
    %1053 = vmatpush.bf16.msra.mxu0 %v746
    %1054 = vmatpush.bf16.msra.mxu0 %v739
    %1055 = vmatpush.bf16.msra.mxu0 %v732
    %1056 = vmatpush.bf16.msra.mxu0 %v725
    %1057 = vmatpush.bf16.msra.mxu0 %v718
    %1058 = vmatmul.bf16.gmra.mxu0 %v232
    %v1059 = vpop.f32.mrf.mxu0
    %v1060 = vadd.f32 0.0, %v1059
    %v1061 = vpop.f32.mrf.mxu0
    %v1062 = vadd.f32 0.0, %v1061
    %1063 = vdwg.mxu0
    %1064 = vmatpush.bf16.msra.mxu0 %v823
    %1065 = vmatpush.bf16.msra.mxu0 %v816
    %1066 = vmatpush.bf16.msra.mxu0 %v809
    %1067 = vmatpush.bf16.msra.mxu0 %v802
    %1068 = vmatpush.bf16.msra.mxu0 %v795
    %1069 = vmatpush.bf16.msra.mxu0 %v788
    %1070 = vmatpush.bf16.msra.mxu0 %v781
    %1071 = vmatpush.bf16.msra.mxu0 %v774
    %1072 = vmatmul.bf16.gmra.mxu0 %v233
    %v1073 = vpop.f32.mrf.mxu0
    %v1074 = vadd.f32 %v1060, %v1073
    %v1075 = vpop.f32.mrf.mxu0
    %v1076 = vadd.f32 %v1062, %v1075
    %1077 = vdwg.mxu0
    %1078 = vmatpush.bf16.msra.mxu0 %v768
    %1079 = vmatpush.bf16.msra.mxu0 %v761
    %1080 = vmatpush.bf16.msra.mxu0 %v754
    %1081 = vmatpush.bf16.msra.mxu0 %v747
    %1082 = vmatpush.bf16.msra.mxu0 %v740
    %1083 = vmatpush.bf16.msra.mxu0 %v733
    %1084 = vmatpush.bf16.msra.mxu0 %v726
    %1085 = vmatpush.bf16.msra.mxu0 %v719
    %1086 = vmatmul.bf16.gmra.mxu0 %v232
    %v1087 = vpop.f32.mrf.mxu0
    %v1088 = vadd.f32 0.0, %v1087
    %v1089 = vpop.f32.mrf.mxu0
    %v1090 = vadd.f32 0.0, %v1089
    %1091 = vdwg.mxu0
    %1092 = vmatpush.bf16.msra.mxu0 %v824
    %1093 = vmatpush.bf16.msra.mxu0 %v817
    %1094 = vmatpush.bf16.msra.mxu0 %v810
    %1095 = vmatpush.bf16.msra.mxu0 %v803
    %1096 = vmatpush.bf16.msra.mxu0 %v796
    %1097 = vmatpush.bf16.msra.mxu0 %v789
    %1098 = vmatpush.bf16.msra.mxu0 %v782
    %1099 = vmatpush.bf16.msra.mxu0 %v775
    %1100 = vmatmul.bf16.gmra.mxu0 %v233
    %v1101 = vpop.f32.mrf.mxu0
    %v1102 = vadd.f32 %v1088, %v1101
    %v1103 = vpop.f32.mrf.mxu0
    %v1104 = vadd.f32 %v1090, %v1103
    %1105 = vdwg.mxu0
    %1106 = vmatpush.bf16.msra.mxu0 %v769
    %1107 = vmatpush.bf16.msra.mxu0 %v762
    %1108 = vmatpush.bf16.msra.mxu0 %v755
    %1109 = vmatpush.bf16.msra.mxu0 %v748
    %1110 = vmatpush.bf16.msra.mxu0 %v741
    %1111 = vmatpush.bf16.msra.mxu0 %v734
    %1112 = vmatpush.bf16.msra.mxu0 %v727
    %1113 = vmatpush.bf16.msra.mxu0 %v720
    %1114 = vmatmul.bf16.gmra.mxu0 %v232
    %v1115 = vpop.f32.mrf.mxu0
    %v1116 = vadd.f32 0.0, %v1115
    %v1117 = vpop.f32.mrf.mxu0
    %v1118 = vadd.f32 0.0, %v1117
    %1119 = vdwg.mxu0
    %1120 = vmatpush.bf16.msra.mxu0 %v825
    %1121 = vmatpush.bf16.msra.mxu0 %v818
    %1122 = vmatpush.bf16.msra.mxu0 %v811
    %1123 = vmatpush.bf16.msra.mxu0 %v804
    %1124 = vmatpush.bf16.msra.mxu0 %v797
    %1125 = vmatpush.bf16.msra.mxu0 %v790
    %1126 = vmatpush.bf16.msra.mxu0 %v783
    %1127 = vmatpush.bf16.msra.mxu0 %v776
    %1128 = vmatmul.bf16.gmra.mxu0 %v233
    %v1129 = vpop.f32.mrf.mxu0
    %v1130 = vadd.f32 %v1116, %v1129
    %v1131 = vpop.f32.mrf.mxu0
    %v1132 = vadd.f32 %v1118, %v1131
    %1133 = vdwg.mxu0
    %v1134 = vld [vmem:[#allocation10] sm:$0x7f]
    %v1136 = vperm.slane %v1134, 0
    %v1137 = vperm.slane %v1134, 1
    %v1138 = vperm.slane %v1134, 2
    %v1139 = vperm.slane %v1134, 3
    %v1140 = vperm.slane %v1134, 4
    %v1141 = vperm.slane %v1134, 5
    %v1142 = vperm.slane %v1134, 6
    %v1150 = vadd.f32 %v962, %v1136
    %v1151 = vadd.f32 %v990, %v1137
    %v1152 = vadd.f32 %v1018, %v1138
    %v1153 = vadd.f32 %v1046, %v1139
    %v1154 = vadd.f32 %v1074, %v1140
    %v1155 = vadd.f32 %v1102, %v1141
    %v1156 = vadd.f32 %v1130, %v1142
    %v1157 = vadd.f32 %v964, %v1136
    %v1158 = vadd.f32 %v992, %v1137
    %v1159 = vadd.f32 %v1020, %v1138
    %v1160 = vadd.f32 %v1048, %v1139
    %v1161 = vadd.f32 %v1076, %v1140
    %v1162 = vadd.f32 %v1104, %v1141
    %v1163 = vadd.f32 %v1132, %v1142
    %v1164 = vtanh.pop %v1150
    %v1165 = vtanh.pop %v1151
    %v1166 = vtanh.pop %v1152
    %v1167 = vtanh.pop %v1153
    %v1168 = vtanh.pop %v1154
    %v1169 = vtanh.pop %v1155
    %v1170 = vtanh.pop %v1156
    %v1171 = vtanh.pop %v1157
    %v1172 = vtanh.pop %v1158
    %v1173 = vtanh.pop %v1159
    %v1174 = vtanh.pop %v1160
    %v1175 = vtanh.pop %v1161
    %v1176 = vtanh.pop %v1162
    %v1177 = vtanh.pop %v1163
    %v1178 = vpack.c.bf16 %v1165, %v1164
    %v1179 = vpack.c.bf16 %v1167, %v1166
    %v1180 = vpack.c.bf16 %v1169, %v1168
    %v1181 = vpack.c.bf16 %v1170, %v1170
    %v1182 = vpack.c.bf16 %v1172, %v1171
    %v1183 = vpack.c.bf16 %v1174, %v1173
    %v1184 = vpack.c.bf16 %v1176, %v1175
    %v1185 = vpack.c.bf16 %v1177, %v1177
    %1186 = vst [vmem:[#allocation11] sm:$0xff] %v1178
    %1187 = vst [vmem:[#allocation11 + $0x8] sm:$0xff] %v1179
    %1188 = vst [vmem:[#allocation11 + $0x10] sm:$0xff] %v1180
    %vm1189 = vcmask 125952
    %1190 = vst.msk [vmem:[#allocation11 + $0x18] sm:$0xf] %vm1189, %v1181
    %1191 = vst [vmem:[#allocation11 + $0x1c] sm:$0xff] %v1182
    %1192 = vst [vmem:[#allocation11 + $0x24] sm:$0xff] %v1183
    %1193 = vst [vmem:[#allocation11 + $0x2c] sm:$0xff] %v1184
    %1194 = vst.msk [vmem:[#allocation11 + $0x34] sm:$0xf] %vm1189, %v1185
    // Predicated region
    $region42: #{tpu_custom_call.1} parent=1 // pred_check
      _
    $region43: #{tpu_custom_call.1} parent=1 // pred_check_branch
      %1196 = sbr.rel (0) target = $region45
    $region44: #{tpu_custom_call.1} parent=1 // pred_region
      %1198 = vsyncadd [#allocation4], 0
      %s1199 = sshll.u32 [#allocation11], 4
      %s1200 = int_to_ptr.vmem [resolvable:$true] %s1199
      %s1201 = sshll.u32 %s5, 4
      %s1202 = int_to_ptr.hbm [resolvable:$true] %s1201
      %1207 = dma.vmem_to_hbm [thread:$0]  %s1200, 896, %s1202, [#allocation4], 448, 448, 28
    $region45: #{tpu_custom_call.1} parent=1 // pred_fallthru
      _
    // Predicated region
    $region46: #{tpu_custom_call.1} parent=1 // pred_check
      _
    $region47: #{tpu_custom_call.1} parent=1 // pred_check_branch
      %1209 = sbr.rel (0) target = $region49
    $region48: #{tpu_custom_call.1} parent=1 // pred_region
      %1211 = dma.done [#allocation4], 896
    $region49: #{tpu_custom_call.1} parent=1 // pred_fallthru
      _
    %1212 = vsyncpa [#allocation3], 1
    %1213 = vsyncpa [#allocation6], 1
    %1214 = vsyncpa [#allocation9], 1
    %1215 = vsyncpa [#allocation4], 1

</llo_original>
